<compile_context>
chip_gen: v7x
topology: tpu7x:2x2x1
jax: 0.10.0
libtpu: 0.0.40
codegen_flags: <defaults>
</compile_context>

<pallas_src>
import functools

import numpy as np
import jax
import jax.numpy as jnp
from jax import lax
from jax.experimental import pallas as pl
from jax.experimental.pallas import tpu as pltpu


def _patch_inflate_kernel(x_ref, w_ref, b_ref, m_ref, o_ref, *, G, W):
    # x_ref: (M, C)     flattened token rows of this batch chunk, M = Bc*H*W
    # w_ref: (C, 4*G)   [WA | WB | WC | WD],  G = 4*in_chans
    # b_ref: (1, 4*G)   bias folded into the WA columns, zeros elsewhere
    # m_ref: (3, M)     {0,1} edge masks: [not-last-col, not-last-row, both]
    # o_ref: (G, M)     lane-dense output tokens (column p = b*H*W + i*W + j)
    M = x_ref.shape[0]

    # Single fused MXU matmul for all 16 taps, f32 accumulation; bias folded in.
    t = jnp.dot(x_ref[...], w_ref[...], preferred_element_type=jnp.float32)
    t = t + b_ref[...]                                       # (M, 4*G)

    # One transpose so H*W sits on lanes for everything downstream.
    tt = t.T                                                 # (4*G, M)
    a = tt[0:G]                                              # taps @ x[i,   j  ]
    bj = tt[G:2 * G]                                         # taps @ x[i,   j+1]
    ci = tt[2 * G:3 * G]                                     # taps @ x[i+1, j  ]
    dd = tt[3 * G:4 * G]                                     # taps @ x[i+1, j+1]

    # Neighbour shifts = flat lane rolls + edge masks.  Every unmasked
    # position reads inside its own image/row, so flat rolls over the Bc*H*W
    # lane axis are exact (image/row boundaries are exactly the masked lanes).
    mk = m_ref[...]
    sj = pltpu.roll(bj, M - 1, axis=1) * mk[0:1, :]          # j -> j+1
    si = pltpu.roll(ci, M - W, axis=1) * mk[1:2, :]          # i -> i+1
    sij = pltpu.roll(dd, M - W - 1, axis=1) * mk[2:3, :]     # both

    o_ref[...] = (a + sj + si + sij).astype(o_ref.dtype)     # one full-width store


def patch_inflated(x, w, b, input_resolution):
    """Forward of PatchInflated.

    x: (B, L, C) with L = H*W;  w: (C, in_chans, 3, 3) PyTorch ConvTranspose2d
    weight;  b: (in_chans,).  Returns (B, in_chans, 2H, 2W).
    """
    H, W = input_resolution
    B, L, C = x.shape
    assert L == H * W, "input feature has wrong size"
    assert H % 2 == 0 and W % 2 == 0, f"x size ({H}*{W}) are not even."
    K = w.shape[1]
    G = 4 * K              # (di, dj, oc) combos per token (output rows)
    N4 = 4 * G             # fused matmul width: A|B|C|D tap groups

    # --- tiny wrapper-side weight repack (C * 16K elements) ----------------
    tap = lambda kh, kw: w[:, :, kh, kw]                     # (C, K)
    z = jnp.zeros((C, K), w.dtype)
    # column within each group = (2*di + dj)*K + oc
    wa = jnp.stack([tap(1, 1), tap(1, 2), tap(2, 1), tap(2, 2)], 1).reshape(C, G)
    wb = jnp.stack([z,         tap(1, 0), z,         tap(2, 0)], 1).reshape(C, G)
    wc = jnp.stack([z,         z,         tap(0, 1), tap(0, 2)], 1).reshape(C, G)
    wd = jnp.stack([z,         z,         z,         tap(0, 0)], 1).reshape(C, G)
    w_all = jnp.concatenate([wa, wb, wc, wd], axis=1)        # (C, 16K)
    bias_ext = jnp.concatenate(
        [jnp.tile(b, 4), jnp.zeros((3 * G,), b.dtype)]).reshape(1, N4)

    # --- batch folding: Bc images per grid step -----------------------------
    # Bc = B//2 keeps the "parallel" grid at >= 2 steps (both v7x TensorCores
    # busy) while M = Bc*L stays large for the MXU / per-step overhead.
    # Fall back to a single whole-batch step when the split is not legal.
    # TODO(synk): for B == 1 on v7x, add a second parallel axis over H.
    if B % 2 == 0 and ((B // 2) * L) % 128 == 0:
        Bc = B // 2
    else:
        Bc = B
    n_steps = B // Bc
    M = Bc * L

    # --- constant {0,1} edge masks, built host-side --------------------------
    p = np.arange(M)
    not_last_col = (p % W) != (W - 1)
    not_last_row = ((p // W) % H) != (H - 1)
    masks = jnp.asarray(
        np.stack([not_last_col, not_last_row,
                  not_last_col & not_last_row]).astype(np.float32))   # (3, M)

    x_flat = x.reshape(B * L, C)                             # free, contiguous

    out_tok = pl.pallas_call(
        functools.partial(_patch_inflate_kernel, G=G, W=W),
        out_shape=jax.ShapeDtypeStruct((G, B * L), x.dtype),
        grid_spec=pltpu.PrefetchScalarGridSpec(
            num_scalar_prefetch=0,
            grid=(n_steps,),
            in_specs=[
                pl.BlockSpec((M, C), lambda i: (i, 0)),
                pl.BlockSpec((C, N4), lambda i: (0, 0)),
                pl.BlockSpec((1, N4), lambda i: (0, 0)),
                pl.BlockSpec((3, M), lambda i: (0, 0)),
            ],
            out_specs=pl.BlockSpec((G, M), lambda i: (0, i)),
        ),
        compiler_params=pltpu.CompilerParams(
            dimension_semantics=("parallel",),
            # TODO(synk): if Bc*L*C per step ever approaches the VMEM budget
            # (64 MiB physical on v7x, 128 MiB on v5e/v6e; keep 2x double
            # buffers under ~75%), tile the grid over H with a one-row halo.
            vmem_limit_bytes=32 * 1024 * 1024),
    )(x_flat, w_all, bias_ext, masks)

    # Tiny depth-to-space on the (in_chans-wide) output — the smallest tensor.
    y = out_tok.reshape(2, 2, K, B, H, W)                    # (di, dj, oc, b, i, j)
    y = jnp.transpose(y, (3, 2, 4, 0, 5, 1))                 # (b, oc, i, di, j, dj)
    return y.reshape(B, K, 2 * H, 2 * W)


def _reference(x, w, b, input_resolution):
    """Independent ConvTranspose2d(3x3, s=2, p=1, op=1) reference via XLA conv."""
    H, W = input_resolution
    B, L, C = x.shape
    K = w.shape[1]
    img = jnp.transpose(x.reshape(B, H, W, C), (0, 3, 1, 2))    # (B, C, H, W)
    w_flip = jnp.flip(w, axis=(2, 3))
    w_oihw = jnp.transpose(w_flip, (1, 0, 2, 3))                # (K, C, 3, 3)
    y = lax.conv_general_dilated(
        img, w_oihw,
        window_strides=(1, 1),
        padding=((1, 2), (1, 2)),                               # (k-1-p, k-1-p+op)
        lhs_dilation=(2, 2),
        dimension_numbers=("NCHW", "OIHW", "NCHW"),
        precision=lax.Precision.HIGHEST)
    return y + b.reshape(1, K, 1, 1)


if __name__ == "__main__":
    key = jax.random.PRNGKey(0)
    B, H, W = 2, 16, 16
    embed_dim, in_chans = 32, 1
    L = H * W

    k1, k2, k3 = jax.random.split(key, 3)
    x = jax.random.normal(k1, (B, L, embed_dim), dtype=jnp.float32)
    w = jax.random.normal(k2, (embed_dim, in_chans, 3, 3), dtype=jnp.float32) * 0.05
    b = 0.1 * jax.random.normal(k3, (in_chans,), dtype=jnp.float32)

    out = patch_inflated(x, w, b, (H, W))
    out = jax.block_until_ready(out)

    ref = _reference(x, w, b, (H, W))
    assert out.shape == (B, in_chans, 2 * H, 2 * W)
    # Loose tolerance covers MXU default-precision matmul vs HIGHEST-precision
    # XLA conv reference; typical max abs diff is far below this.
    assert jnp.allclose(out, ref, atol=1e-2, rtol=1e-2)
    print("KERNEL_OK")
</pallas_src>

<mosaic_0001>
module attributes {stable_mosaic.version = 11 : i64} {
  func.func @_patch_inflate_kernel(%arg0: i32, %arg1: memref<256x32xf32, #tpu.memory_space<vmem>>, %arg2: memref<32x16xf32, #tpu.memory_space<vmem>>, %arg3: memref<1x16xf32, #tpu.memory_space<vmem>>, %arg4: memref<3x256xf32, #tpu.memory_space<vmem>>, %arg5: memref<4x256xf32, #tpu.memory_space<vmem>>) attributes {dimension_semantics = [#tpu.dimension_semantics<parallel>], iteration_bounds = array<i64: 2>, scalar_prefetch = 0 : i64, scratch_operands = 0 : i64, tpu.core_type = #tpu.core_type<tc>, window_params = [{transform_indices = @transform_0, window_bounds = array<i64: 256, 32>}, {pipeline_mode = #tpu.pipeline_mode<synchronous>, transform_indices = @transform_1, window_bounds = array<i64: 32, 16>}, {pipeline_mode = #tpu.pipeline_mode<synchronous>, transform_indices = @transform_2, window_bounds = array<i64: 1, 16>}, {pipeline_mode = #tpu.pipeline_mode<synchronous>, transform_indices = @transform_3, window_bounds = array<i64: 3, 256>}, {transform_indices = @transform_4, window_bounds = array<i64: 4, 256>}]} {
    %c0 = arith.constant 0 : index
    %c0_0 = arith.constant 0 : index
    %0 = vector.load %arg1[%c0, %c0_0] : memref<256x32xf32, #tpu.memory_space<vmem>>, vector<256x32xf32>
    %c0_1 = arith.constant 0 : index
    %c0_2 = arith.constant 0 : index
    %1 = vector.load %arg2[%c0_1, %c0_2] : memref<32x16xf32, #tpu.memory_space<vmem>>, vector<32x16xf32>
    %cst = arith.constant dense<0.000000e+00> : vector<256x16xf32>
    %2 = tpu.matmul %0, %1, %cst {dimension_numbers = #tpu.dot_dimension_numbers<[1], [0], [0], [1], [0, 0, 1, 1], [], []>} : vector<256x32xf32>, vector<32x16xf32>, vector<256x16xf32> -> vector<256x16xf32>
    %c0_3 = arith.constant 0 : index
    %c0_4 = arith.constant 0 : index
    %3 = vector.load %arg3[%c0_3, %c0_4] : memref<1x16xf32, #tpu.memory_space<vmem>>, vector<1x16xf32>
    %4 = vector.broadcast %3 : vector<1x16xf32> to vector<256x16xf32>
    %5 = arith.addf %2, %4 : vector<256x16xf32>
    %6 = tpu.transpose %5, [1, 0] : vector<256x16xf32> -> vector<16x256xf32>
    %7 = vector.extract_strided_slice %6 {offsets = [0, 0], sizes = [4, 256], strides = [1, 1]} : vector<16x256xf32> to vector<4x256xf32>
    %8 = vector.extract_strided_slice %6 {offsets = [4, 0], sizes = [4, 256], strides = [1, 1]} : vector<16x256xf32> to vector<4x256xf32>
    %9 = vector.extract_strided_slice %6 {offsets = [8, 0], sizes = [4, 256], strides = [1, 1]} : vector<16x256xf32> to vector<4x256xf32>
    %10 = vector.extract_strided_slice %6 {offsets = [12, 0], sizes = [4, 256], strides = [1, 1]} : vector<16x256xf32> to vector<4x256xf32>
    %c0_5 = arith.constant 0 : index
    %c0_6 = arith.constant 0 : index
    %11 = vector.load %arg4[%c0_5, %c0_6] : memref<3x256xf32, #tpu.memory_space<vmem>>, vector<3x256xf32>
    %c255_i32 = arith.constant 255 : i32
    %12 = tpu.dynamic_rotate %8 by %c255_i32 dim 1 : vector<4x256xf32>, i32 -> vector<4x256xf32>
    %13 = vector.extract_strided_slice %11 {offsets = [0, 0], sizes = [1, 256], strides = [1, 1]} : vector<3x256xf32> to vector<1x256xf32>
    %14 = vector.broadcast %13 : vector<1x256xf32> to vector<4x256xf32>
    %15 = arith.mulf %12, %14 : vector<4x256xf32>
    %c240_i32 = arith.constant 240 : i32
    %16 = tpu.dynamic_rotate %9 by %c240_i32 dim 1 : vector<4x256xf32>, i32 -> vector<4x256xf32>
    %17 = vector.extract_strided_slice %11 {offsets = [1, 0], sizes = [1, 256], strides = [1, 1]} : vector<3x256xf32> to vector<1x256xf32>
    %18 = vector.broadcast %17 : vector<1x256xf32> to vector<4x256xf32>
    %19 = arith.mulf %16, %18 : vector<4x256xf32>
    %c239_i32 = arith.constant 239 : i32
    %20 = tpu.dynamic_rotate %10 by %c239_i32 dim 1 : vector<4x256xf32>, i32 -> vector<4x256xf32>
    %21 = vector.extract_strided_slice %11 {offsets = [2, 0], sizes = [1, 256], strides = [1, 1]} : vector<3x256xf32> to vector<1x256xf32>
    %22 = vector.broadcast %21 : vector<1x256xf32> to vector<4x256xf32>
    %23 = arith.mulf %20, %22 : vector<4x256xf32>
    %24 = arith.addf %7, %15 : vector<4x256xf32>
    %25 = arith.addf %24, %19 : vector<4x256xf32>
    %26 = arith.addf %25, %23 : vector<4x256xf32>
    %c0_7 = arith.constant 0 : index
    %c0_8 = arith.constant 0 : index
    %27 = vector.load %arg5[%c0_7, %c0_8] : memref<4x256xf32, #tpu.memory_space<vmem>>, vector<4x256xf32>
    tpu.vector_store %arg5[%c0_7, %c0_8], %26 {strides = array<i32>} : memref<4x256xf32, #tpu.memory_space<vmem>>, vector<4x256xf32>,
    return
  }
  func.func @transform_0(%arg0: i32) -> (i32, i32) {
    %c0_i32 = arith.constant 0 : i32
    %c0_i32_0 = arith.constant 0 : i32
    return %arg0, %c0_i32 : i32, i32
  }
  func.func @transform_1(%arg0: i32) -> (i32, i32) {
    %c0_i32 = arith.constant 0 : i32
    %c0_i32_0 = arith.constant 0 : i32
    %c0_i32_1 = arith.constant 0 : i32
    return %c0_i32, %c0_i32_0 : i32, i32
  }
  func.func @transform_2(%arg0: i32) -> (i32, i32) {
    %c0_i32 = arith.constant 0 : i32
    %c0_i32_0 = arith.constant 0 : i32
    %c0_i32_1 = arith.constant 0 : i32
    return %c0_i32, %c0_i32_0 : i32, i32
  }
  func.func @transform_3(%arg0: i32) -> (i32, i32) {
    %c0_i32 = arith.constant 0 : i32
    %c0_i32_0 = arith.constant 0 : i32
    %c0_i32_1 = arith.constant 0 : i32
    return %c0_i32, %c0_i32_0 : i32, i32
  }
  func.func @transform_4(%arg0: i32) -> (i32, i32) {
    %c0_i32 = arith.constant 0 : i32
    %c0_i32_0 = arith.constant 0 : i32
    return %c0_i32, %arg0 : i32, i32
  }
}

</mosaic_0001>

<llo_original>
// kernel: tpu_custom_call.1
$region0: #{tpu_custom_call.1}
  #allocation0 [shape = 'u32[]', space=smem, size = 0x4, offset = 0x4, fixed_abs, tag = 'smem constant byte address 0x4 - core index']
  #allocation1 [shape = 'u32[144,128]{1,0:T(1,128)}', space=vmem, size = 0x12000, scoped, tag = 'internal scratch']
  %s0 = inlined_call_operand.vmem [shape: f32[512,32], index: 0, kind: input, shape index: {}]
  %s1 = inlined_call_operand.vmem [shape: f32[32,16], index: 1, kind: input, shape index: {}]
  %s2 = inlined_call_operand.vmem [shape: f32[1,16], index: 2, kind: input, shape index: {}]
  %s3 = inlined_call_operand.vmem [shape: f32[3,256], index: 3, kind: input, shape index: {}]
  %s4 = inlined_call_operand.hbm [shape: f32[4,512], index: 4, kind: output, shape index: {}]
  %s5 = sld [smem:[#allocation0]]
  $region49: #{tpu_custom_call.1} parent=0
    _
  %s7 = ssub.s32 1, %s5
  %s8 = scalar_select 0, %s7, %s5
  $region1: #{tpu_custom_call.1} parent=0
    #allocation2 [shape = 'u8[8192]{0}', space=vmem, size = 0x2000, scoped, tag = 'output window, operand 0']
    #allocation3 [shape = 's32[2]{0}', space=sflag, size = 0x8, scoped, tag = 'scoped memory for tpu_custom_call.1']
    %9 = vsyncpa [#allocation3], 0
    %s10 = scalar_lea.sflag [#allocation3], 1
    %11 = vsyncpa %s10, 0
    loop: start=0, step=1, limit=4
    $region2: #{tpu_custom_call.1} parent=1 // loop_pre_header
      _
    $region3: #{tpu_custom_call.1} parent=1 // loop_header
      %s13 = sphi 0, %s17
      %p14 = scmp.ge.s32.totalorder %s13, 4
      %s23 = sphi 0, %s25
      %s26 = sphi 0, %s23
      %s27 = sphi 0, %s26
      %s43 = sphi 0, %s27
      %s47 = sphi 0, %s47
      %s49 = sphi 0, %s47
      %s50 = sphi 0, %s49
      %s64 = sphi 0, %s50
      %s68 = sphi 0, %s68
      %s70 = sphi 0, %s68
      %s71 = sphi 0, %s70
      %s85 = sphi 0, %s71
      %s89 = sphi 0, %s89
      %s91 = sphi 0, %s89
      %s92 = sphi 0, %s91
      %s106 = sphi 0, %s92
      %s112 = sphi 0, %s114
      %s115 = sphi 0, %s112
      %s116 = sphi 0, %s115
      %s132 = sphi 0, %s116
    $region4: #{tpu_custom_call.1} parent=1 // loop_header_branch
      %16 = sbr.rel (%p14) target = $region8
    $region5: #{tpu_custom_call.1} parent=1 // loop_body
      %s18 = ssub.s32 %s13, 1
      %s19 = ssub.s32 %s13, 2
      %s20 = sadd.s32 %s13, 1
      %s21 = ssub.s32 %s13, %s20
      %p22 = scmp.eq.s32.totalorder %s21, 0
      %s24 = sadd.s32 %s23, 1
      %s25 = scalar_select %p22, %s23, %s24
      %p28 = pneg %p22
      %p29 = scmp.eq.s32.totalorder %s13, 1
      %p30 = por %p28, %p29
      %p31 = scmp.ne.s32.totalorder %s23, %s26
      %p32 = scmp.eq.s32.totalorder %s13, 0
      %p33 = por %p31, %p32
      %p34 = scmp.ne.s32.totalorder %s23, %s26
      %p35 = scmp.eq.s32.totalorder %s18, 1
      %p36 = por %p34, %p35
      %p37 = scmp.ne.s32.totalorder %s26, %s27
      %p38 = scmp.eq.s32.totalorder %s18, 0
      %p39 = por %p37, %p38
      %p40 = scmp.ne.s32.totalorder %s26, %s27
      %p41 = scmp.eq.s32.totalorder %s19, 1
      %p42 = por %p40, %p41
      %p44 = scmp.ne.s32.totalorder %s27, %s43
      %p45 = scmp.eq.s32.totalorder %s19, 0
      %p46 = por %p44, %p45
      %s48 = sadd.s32 %s47, 1
      %p51 = scmp.eq.s32.totalorder %s13, 1
      %p52 = scmp.ne.s32.totalorder %s47, %s49
      %p53 = scmp.eq.s32.totalorder %s13, 0
      %p54 = por %p52, %p53
      %p55 = scmp.ne.s32.totalorder %s47, %s49
      %p56 = scmp.eq.s32.totalorder %s18, 1
      %p57 = por %p55, %p56
      %p58 = scmp.ne.s32.totalorder %s49, %s50
      %p59 = scmp.eq.s32.totalorder %s18, 0
      %p60 = por %p58, %p59
      %p61 = scmp.ne.s32.totalorder %s49, %s50
      %p62 = scmp.eq.s32.totalorder %s19, 1
      %p63 = por %p61, %p62
      %p65 = scmp.ne.s32.totalorder %s50, %s64
      %p66 = scmp.eq.s32.totalorder %s19, 0
      %p67 = por %p65, %p66
      %s69 = sadd.s32 %s68, 1
      %p72 = scmp.eq.s32.totalorder %s13, 1
      %p73 = scmp.ne.s32.totalorder %s68, %s70
      %p74 = scmp.eq.s32.totalorder %s13, 0
      %p75 = por %p73, %p74
      %p76 = scmp.ne.s32.totalorder %s68, %s70
      %p77 = scmp.eq.s32.totalorder %s18, 1
      %p78 = por %p76, %p77
      %p79 = scmp.ne.s32.totalorder %s70, %s71
      %p80 = scmp.eq.s32.totalorder %s18, 0
      %p81 = por %p79, %p80
      %p82 = scmp.ne.s32.totalorder %s70, %s71
      %p83 = scmp.eq.s32.totalorder %s19, 1
      %p84 = por %p82, %p83
      %p86 = scmp.ne.s32.totalorder %s71, %s85
      %p87 = scmp.eq.s32.totalorder %s19, 0
      %p88 = por %p86, %p87
      %s90 = sadd.s32 %s89, 1
      %p93 = scmp.eq.s32.totalorder %s13, 1
      %p94 = scmp.ne.s32.totalorder %s89, %s91
      %p95 = scmp.eq.s32.totalorder %s13, 0
      %p96 = por %p94, %p95
      %p97 = scmp.ne.s32.totalorder %s89, %s91
      %p98 = scmp.eq.s32.totalorder %s18, 1
      %p99 = por %p97, %p98
      %p100 = scmp.ne.s32.totalorder %s91, %s92
      %p101 = scmp.eq.s32.totalorder %s18, 0
      %p102 = por %p100, %p101
      %p103 = scmp.ne.s32.totalorder %s91, %s92
      %p104 = scmp.eq.s32.totalorder %s19, 1
      %p105 = por %p103, %p104
      %p107 = scmp.ne.s32.totalorder %s92, %s106
      %p108 = scmp.eq.s32.totalorder %s19, 0
      %p109 = por %p107, %p108
      %s110 = ssub.s32 %s13, %s20
      %p111 = scmp.eq.s32.totalorder %s110, 0
      %s113 = sadd.s32 %s112, 1
      %s114 = scalar_select %p111, %s112, %s113
      %p117 = pneg %p111
      %p118 = scmp.eq.s32.totalorder %s13, 1
      %p119 = por %p117, %p118
      %p120 = scmp.ne.s32.totalorder %s112, %s115
      %p121 = scmp.eq.s32.totalorder %s13, 0
      %p122 = por %p120, %p121
      %p123 = scmp.ne.s32.totalorder %s112, %s115
      %p124 = scmp.eq.s32.totalorder %s18, 1
      %p125 = por %p123, %p124
      %p126 = scmp.ne.s32.totalorder %s115, %s116
      %p127 = scmp.eq.s32.totalorder %s18, 0
      %p128 = por %p126, %p127
      %p129 = scmp.ne.s32.totalorder %s115, %s116
      %p130 = scmp.eq.s32.totalorder %s19, 1
      %p131 = por %p129, %p130
      %p133 = scmp.ne.s32.totalorder %s116, %s132
      %p134 = scmp.eq.s32.totalorder %s19, 0
      %p135 = por %p133, %p134
      %p136 = scmp.le.s32.totalorder 1, %s13
      %p137 = scmp.lt.s32.totalorder %s13, 3
      %p138 = pnand %p136, %p137
      %p139 = pneg %p138
      // Predicated region
      $region9: #{tpu_custom_call.1} parent=5 // pred_check
        _
      $region10: #{tpu_custom_call.1} parent=5 // pred_check_branch
        %141 = sbr.rel (%p138) target = $region12
      $region11: #{tpu_custom_call.1} parent=5 // pred_region
        %s142 = ssub.s32 %s13, 1
        // Predicated region
        $region13: #{tpu_custom_call.1} parent=11 // pred_check
          %p143 = pneg %p60
        $region14: #{tpu_custom_call.1} parent=11 // pred_check_branch
          %145 = sbr.rel (%p143) target = $region16
        $region15: #{tpu_custom_call.1} parent=11 // pred_region
          _
        $region16: #{tpu_custom_call.1} parent=11 // pred_fallthru
          _
        // Predicated region
        $region17: #{tpu_custom_call.1} parent=11 // pred_check
          %p146 = pneg %p81
        $region18: #{tpu_custom_call.1} parent=11 // pred_check_branch
          %148 = sbr.rel (%p146) target = $region20
        $region19: #{tpu_custom_call.1} parent=11 // pred_region
          _
        $region20: #{tpu_custom_call.1} parent=11 // pred_fallthru
          _
        // Predicated region
        $region21: #{tpu_custom_call.1} parent=11 // pred_check
          %p149 = pneg %p102
        $region22: #{tpu_custom_call.1} parent=11 // pred_check_branch
          %151 = sbr.rel (%p149) target = $region24
        $region23: #{tpu_custom_call.1} parent=11 // pred_region
          _
        $region24: #{tpu_custom_call.1} parent=11 // pred_fallthru
          _
      $region12: #{tpu_custom_call.1} parent=5 // pred_fallthru
        _
      %p152 = scmp.lt.s32.totalorder %s13, 2
      // Predicated region
      $region25: #{tpu_custom_call.1} parent=5 // pred_check
        %p153 = pneg %p152
      $region26: #{tpu_custom_call.1} parent=5 // pred_check_branch
        %155 = sbr.rel (%p153) target = $region28
      $region27: #{tpu_custom_call.1} parent=5 // pred_region
        // Predicated region
        $region29: #{tpu_custom_call.1} parent=27 // pred_check
          %p156 = pneg %p33
        $region30: #{tpu_custom_call.1} parent=27 // pred_check_branch
          %158 = sbr.rel (%p156) target = $region32
        $region31: #{tpu_custom_call.1} parent=27 // pred_region
          %s159 = smul.u32 32, %s13
          %p160 = scmp.lt.s32.totalorder %s159, 63
          %s161 = scalar_select %p160, %s159, 63
          %s162 = smul.addr %s161, 8
          %s163 = scalar_lea.vmem %s0, %s162
          %s164 = smul.u32 32, %s13
        $region32: #{tpu_custom_call.1} parent=27 // pred_fallthru
          _
      $region28: #{tpu_custom_call.1} parent=5 // pred_fallthru
        _
      %p165 = scmp.le.s32.totalorder 1, %s13
      %p166 = scmp.lt.s32.totalorder %s13, 3
      %p167 = pnand %p165, %p166
      %p168 = pneg %p167
      // Predicated region
      $region33: #{tpu_custom_call.1} parent=5 // pred_check
        _
      $region34: #{tpu_custom_call.1} parent=5 // pred_check_branch
        %170 = sbr.rel (%p167) target = $region36
      $region35: #{tpu_custom_call.1} parent=5 // pred_region
        %s171 = ssub.s32 %s13, 1
        %s172 = smul.u32 32, %s18
        %p173 = scmp.lt.s32.totalorder %s172, 63
        %s174 = scalar_select %p173, %s172, 63
        %s175 = smul.addr %s174, 8
        %s176 = scalar_lea.vmem %s0, %s175
        %p177 = pneg %p39
        %p178 = pneg %p36
        %p179 = pneg %p60
        %p180 = pneg %p57
        %p181 = pneg %p81
        %p182 = pneg %p78
        %p183 = pneg %p102
        %p184 = pneg %p99
        %p185 = pneg %p128
        %p186 = pneg %p125
        %s187 = sand.u32 %s115, 1
        %s188 = scalar_lea.sflag [#allocation3], %s187
        %s189 = sand.u32 %s115, 1
        %s190 = smul.addr %s189, 8
        %s191 = scalar_lea.vmem [#allocation2], %s190
        %s192 = smul.u32 32, %s18
        %p193 = scmp.lt.s32.totalorder %s192, 63
        %s194 = scalar_select %p193, %s192, 63
        %s195 = smul.addr %s194, 8
        %s196 = scalar_lea.vmem %s0, %s195
        %s197 = smul.u32 32, %s18
        %s198 = smul.u32 2, %s18
        %v199 = vld [vmem:[%s196] sm:$0xff]
        %v200 = vld [vmem:[%s196 + $0x8] sm:$0xff]
        %v201 = vld [vmem:[%s196 + $0x10] sm:$0xff]
        %v202 = vld [vmem:[%s196 + $0x18] sm:$0xff]
        %v203 = vld [vmem:[%s196 + $0x20] sm:$0xff]
        %v204 = vld [vmem:[%s196 + $0x28] sm:$0xff]
        %v205 = vld [vmem:[%s196 + $0x30] sm:$0xff]
        %v206 = vld [vmem:[%s196 + $0x38] sm:$0xff]
        %v207 = vld [vmem:[%s196 + $0x40] sm:$0xff]
        %v208 = vld [vmem:[%s196 + $0x48] sm:$0xff]
        %v209 = vld [vmem:[%s196 + $0x50] sm:$0xff]
        %v210 = vld [vmem:[%s196 + $0x58] sm:$0xff]
        %v211 = vld [vmem:[%s196 + $0x60] sm:$0xff]
        %v212 = vld [vmem:[%s196 + $0x68] sm:$0xff]
        %v213 = vld [vmem:[%s196 + $0x70] sm:$0xff]
        %v214 = vld [vmem:[%s196 + $0x78] sm:$0xff]
        %v215 = vld [vmem:[%s196 + $0x80] sm:$0xff]
        %v216 = vld [vmem:[%s196 + $0x88] sm:$0xff]
        %v217 = vld [vmem:[%s196 + $0x90] sm:$0xff]
        %v218 = vld [vmem:[%s196 + $0x98] sm:$0xff]
        %v219 = vld [vmem:[%s196 + $0xa0] sm:$0xff]
        %v220 = vld [vmem:[%s196 + $0xa8] sm:$0xff]
        %v221 = vld [vmem:[%s196 + $0xb0] sm:$0xff]
        %v222 = vld [vmem:[%s196 + $0xb8] sm:$0xff]
        %v223 = vld [vmem:[%s196 + $0xc0] sm:$0xff]
        %v224 = vld [vmem:[%s196 + $0xc8] sm:$0xff]
        %v225 = vld [vmem:[%s196 + $0xd0] sm:$0xff]
        %v226 = vld [vmem:[%s196 + $0xd8] sm:$0xff]
        %v227 = vld [vmem:[%s196 + $0xe0] sm:$0xff]
        %v228 = vld [vmem:[%s196 + $0xe8] sm:$0xff]
        %v229 = vld [vmem:[%s196 + $0xf0] sm:$0xff]
        %v230 = vld [vmem:[%s196 + $0xf8] sm:$0xff]
        %v231 = vld [vmem:[%s1] sm:$0xff]
        %v232 = vld [vmem:[%s1 + $0x8] sm:$0xff]
        %v233 = vld [vmem:[%s1 + $0x10] sm:$0xff]
        %v234 = vld [vmem:[%s1 + $0x18] sm:$0xff]
        %v235 = vld [vmem:[%s2] sm:$0x1]
        %v237 = vlaneseq
        %v238 = vshrl.u32 %v237, 7
        %v239 = vsub.s32 0, %v238
        %v240 = vrot.slane %v235, %v239
        %vm242 = vcmask 261120
        %v244 = vsel %vm242, %v199, 0
        %v247 = vsel %vm242, %v200, 0
        %v250 = vsel %vm242, %v201, 0
        %v253 = vsel %vm242, %v202, 0
        %v256 = vsel %vm242, %v203, 0
        %v259 = vsel %vm242, %v204, 0
        %v262 = vsel %vm242, %v205, 0
        %v265 = vsel %vm242, %v206, 0
        %v268 = vsel %vm242, %v207, 0
        %v271 = vsel %vm242, %v208, 0
        %v274 = vsel %vm242, %v209, 0
        %v277 = vsel %vm242, %v210, 0
        %v280 = vsel %vm242, %v211, 0
        %v283 = vsel %vm242, %v212, 0
        %v286 = vsel %vm242, %v213, 0
        %v289 = vsel %vm242, %v214, 0
        %v292 = vsel %vm242, %v215, 0
        %v295 = vsel %vm242, %v216, 0
        %v298 = vsel %vm242, %v217, 0
        %v301 = vsel %vm242, %v218, 0
        %v304 = vsel %vm242, %v219, 0
        %v307 = vsel %vm242, %v220, 0
        %v310 = vsel %vm242, %v221, 0
        %v313 = vsel %vm242, %v222, 0
        %v316 = vsel %vm242, %v223, 0
        %v319 = vsel %vm242, %v224, 0
        %v322 = vsel %vm242, %v225, 0
        %v325 = vsel %vm242, %v226, 0
        %v328 = vsel %vm242, %v227, 0
        %v331 = vsel %vm242, %v228, 0
        %v334 = vsel %vm242, %v229, 0
        %v337 = vsel %vm242, %v230, 0
        %339 = vmatprep.subr.mxu0 0.0
        %340 = vmatpush1.msra.mxu0 %v231
        %341 = vmatprep.subr.mxu0 0.0
        %342 = vmatpush1.msra.mxu0 %v232
        %343 = vmatprep.subr.mxu0 0.0
        %344 = vmatpush1.msra.mxu0 %v233
        %345 = vmatprep.subr.mxu0 0.0
        %346 = vmatpush1.msra.mxu0 %v234
        %347 = vmatprep.subr.mxu0 0.0
        %348 = vmatpush1.msra.mxu0 0.0
        %349 = vmatprep.subr.mxu0 0.0
        %350 = vmatpush1.msra.mxu0 0.0
        %351 = vmatprep.subr.mxu0 0.0
        %352 = vmatpush1.msra.mxu0 0.0
        %353 = vmatprep.subr.mxu0 0.0
        %354 = vmatpush1.msra.mxu0 0.0
        %355 = vmatprep.subr.mxu0 0.0
        %356 = vmatpush1.msra.mxu0 0.0
        %357 = vmatprep.subr.mxu0 0.0
        %358 = vmatpush1.msra.mxu0 0.0
        %359 = vmatprep.subr.mxu0 0.0
        %360 = vmatpush1.msra.mxu0 0.0
        %361 = vmatprep.subr.mxu0 0.0
        %362 = vmatpush1.msra.mxu0 0.0
        %363 = vmatprep.subr.mxu0 0.0
        %364 = vmatpush1.msra.mxu0 0.0
        %365 = vmatprep.subr.mxu0 0.0
        %366 = vmatpush1.msra.mxu0 0.0
        %367 = vmatprep.subr.mxu0 0.0
        %368 = vmatpush1.msra.mxu0 0.0
        %369 = vmatprep.subr.mxu0 0.0
        %370 = vmatpush1.msra.mxu0 0.0
        %371 = vmatprep.subr.mxu0 0.0
        %372 = vmatpush1.msra.mxu0 0.0
        %373 = vmatprep.subr.mxu0 0.0
        %374 = vmatpush1.msra.mxu0 0.0
        %375 = vmatprep.subr.mxu0 0.0
        %376 = vmatpush1.msra.mxu0 0.0
        %377 = vmatprep.subr.mxu0 0.0
        %378 = vmatpush1.msra.mxu0 0.0
        %379 = vmatprep.subr.mxu0 0.0
        %380 = vmatpush1.msra.mxu0 0.0
        %381 = vmatprep.subr.mxu0 0.0
        %382 = vmatpush1.msra.mxu0 0.0
        %383 = vmatprep.subr.mxu0 0.0
        %384 = vmatpush1.msra.mxu0 0.0
        %385 = vmatprep.subr.mxu0 0.0
        %386 = vmatpush1.msra.mxu0 0.0
        %387 = vmatprep.subr.mxu0 0.0
        %388 = vmatpush1.msra.mxu0 0.0
        %389 = vmatprep.subr.mxu0 0.0
        %390 = vmatpush1.msra.mxu0 0.0
        %391 = vmatprep.subr.mxu0 0.0
        %392 = vmatpush1.msra.mxu0 0.0
        %393 = vmatprep.subr.mxu0 0.0
        %394 = vmatpush1.msra.mxu0 0.0
        %395 = vmatprep.subr.mxu0 0.0
        %396 = vmatpush1.msra.mxu0 0.0
        %397 = vmatprep.subr.mxu0 0.0
        %398 = vmatpush1.msra.mxu0 0.0
        %399 = vmatprep.subr.mxu0 0.0
        %400 = vmatpush1.msra.mxu0 0.0
        %401 = vmatprep.subr.mxu0 0.0
        %402 = vmatpush1.msra.mxu0 0.0
        %403 = vmatprep.mubr.f32.mxu0 0.0
        %404 = vmatmul.mubr.f32.gmra.mrb[0].mxu0 %v244
        %v405 = vpop.f32.mrb[0].mxu0
        %v406 = vadd.f32 %v240, %v405
        %v407 = vpop.f32.mrb[0].mxu0
        %408 = vmatprep.mubr.f32.mxu0 0.0
        %409 = vmatmul.mubr.f32.gmra.mrb[0].mxu0 %v247
        %v410 = vpop.f32.mrb[0].mxu0
        %v411 = vadd.f32 %v240, %v410
        %v412 = vpop.f32.mrb[0].mxu0
        %413 = vmatprep.mubr.f32.mxu0 0.0
        %414 = vmatmul.mubr.f32.gmra.mrb[0].mxu0 %v250
        %v415 = vpop.f32.mrb[0].mxu0
        %v416 = vadd.f32 %v240, %v415
        %v417 = vpop.f32.mrb[0].mxu0
        %418 = vmatprep.mubr.f32.mxu0 0.0
        %419 = vmatmul.mubr.f32.gmra.mrb[0].mxu0 %v253
        %v420 = vpop.f32.mrb[0].mxu0
        %v421 = vadd.f32 %v240, %v420
        %v422 = vpop.f32.mrb[0].mxu0
        %423 = vmatprep.mubr.f32.mxu0 0.0
        %424 = vmatmul.mubr.f32.gmra.mrb[0].mxu0 %v256
        %v425 = vpop.f32.mrb[0].mxu0
        %v426 = vadd.f32 %v240, %v425
        %v427 = vpop.f32.mrb[0].mxu0
        %428 = vmatprep.mubr.f32.mxu0 0.0
        %429 = vmatmul.mubr.f32.gmra.mrb[0].mxu0 %v259
        %v430 = vpop.f32.mrb[0].mxu0
        %v431 = vadd.f32 %v240, %v430
        %v432 = vpop.f32.mrb[0].mxu0
        %433 = vmatprep.mubr.f32.mxu0 0.0
        %434 = vmatmul.mubr.f32.gmra.mrb[0].mxu0 %v262
        %v435 = vpop.f32.mrb[0].mxu0
        %v436 = vadd.f32 %v240, %v435
        %v437 = vpop.f32.mrb[0].mxu0
        %438 = vmatprep.mubr.f32.mxu0 0.0
        %439 = vmatmul.mubr.f32.gmra.mrb[0].mxu0 %v265
        %v440 = vpop.f32.mrb[0].mxu0
        %v441 = vadd.f32 %v240, %v440
        %v442 = vpop.f32.mrb[0].mxu0
        %443 = vmatprep.mubr.f32.mxu0 0.0
        %444 = vmatmul.mubr.f32.gmra.mrb[0].mxu0 %v268
        %v445 = vpop.f32.mrb[0].mxu0
        %v446 = vadd.f32 %v240, %v445
        %v447 = vpop.f32.mrb[0].mxu0
        %448 = vmatprep.mubr.f32.mxu0 0.0
        %449 = vmatmul.mubr.f32.gmra.mrb[0].mxu0 %v271
        %v450 = vpop.f32.mrb[0].mxu0
        %v451 = vadd.f32 %v240, %v450
        %v452 = vpop.f32.mrb[0].mxu0
        %453 = vmatprep.mubr.f32.mxu0 0.0
        %454 = vmatmul.mubr.f32.gmra.mrb[0].mxu0 %v274
        %v455 = vpop.f32.mrb[0].mxu0
        %v456 = vadd.f32 %v240, %v455
        %v457 = vpop.f32.mrb[0].mxu0
        %458 = vmatprep.mubr.f32.mxu0 0.0
        %459 = vmatmul.mubr.f32.gmra.mrb[0].mxu0 %v277
        %v460 = vpop.f32.mrb[0].mxu0
        %v461 = vadd.f32 %v240, %v460
        %v462 = vpop.f32.mrb[0].mxu0
        %463 = vmatprep.mubr.f32.mxu0 0.0
        %464 = vmatmul.mubr.f32.gmra.mrb[0].mxu0 %v280
        %v465 = vpop.f32.mrb[0].mxu0
        %v466 = vadd.f32 %v240, %v465
        %v467 = vpop.f32.mrb[0].mxu0
        %468 = vmatprep.mubr.f32.mxu0 0.0
        %469 = vmatmul.mubr.f32.gmra.mrb[0].mxu0 %v283
        %v470 = vpop.f32.mrb[0].mxu0
        %v471 = vadd.f32 %v240, %v470
        %v472 = vpop.f32.mrb[0].mxu0
        %473 = vmatprep.mubr.f32.mxu0 0.0
        %474 = vmatmul.mubr.f32.gmra.mrb[0].mxu0 %v286
        %v475 = vpop.f32.mrb[0].mxu0
        %v476 = vadd.f32 %v240, %v475
        %v477 = vpop.f32.mrb[0].mxu0
        %478 = vmatprep.mubr.f32.mxu0 0.0
        %479 = vmatmul.mubr.f32.gmra.mrb[0].mxu0 %v289
        %v480 = vpop.f32.mrb[0].mxu0
        %v481 = vadd.f32 %v240, %v480
        %v482 = vpop.f32.mrb[0].mxu0
        %483 = vmatprep.mubr.f32.mxu0 0.0
        %484 = vmatmul.mubr.f32.gmra.mrb[0].mxu0 %v292
        %v485 = vpop.f32.mrb[0].mxu0
        %v486 = vadd.f32 %v240, %v485
        %v487 = vpop.f32.mrb[0].mxu0
        %488 = vmatprep.mubr.f32.mxu0 0.0
        %489 = vmatmul.mubr.f32.gmra.mrb[0].mxu0 %v295
        %v490 = vpop.f32.mrb[0].mxu0
        %v491 = vadd.f32 %v240, %v490
        %v492 = vpop.f32.mrb[0].mxu0
        %493 = vmatprep.mubr.f32.mxu0 0.0
        %494 = vmatmul.mubr.f32.gmra.mrb[0].mxu0 %v298
        %v495 = vpop.f32.mrb[0].mxu0
        %v496 = vadd.f32 %v240, %v495
        %v497 = vpop.f32.mrb[0].mxu0
        %498 = vmatprep.mubr.f32.mxu0 0.0
        %499 = vmatmul.mubr.f32.gmra.mrb[0].mxu0 %v301
        %v500 = vpop.f32.mrb[0].mxu0
        %v501 = vadd.f32 %v240, %v500
        %v502 = vpop.f32.mrb[0].mxu0
        %503 = vmatprep.mubr.f32.mxu0 0.0
        %504 = vmatmul.mubr.f32.gmra.mrb[0].mxu0 %v304
        %v505 = vpop.f32.mrb[0].mxu0
        %v506 = vadd.f32 %v240, %v505
        %v507 = vpop.f32.mrb[0].mxu0
        %508 = vmatprep.mubr.f32.mxu0 0.0
        %509 = vmatmul.mubr.f32.gmra.mrb[0].mxu0 %v307
        %v510 = vpop.f32.mrb[0].mxu0
        %v511 = vadd.f32 %v240, %v510
        %v512 = vpop.f32.mrb[0].mxu0
        %513 = vmatprep.mubr.f32.mxu0 0.0
        %514 = vmatmul.mubr.f32.gmra.mrb[0].mxu0 %v310
        %v515 = vpop.f32.mrb[0].mxu0
        %v516 = vadd.f32 %v240, %v515
        %v517 = vpop.f32.mrb[0].mxu0
        %518 = vmatprep.mubr.f32.mxu0 0.0
        %519 = vmatmul.mubr.f32.gmra.mrb[0].mxu0 %v313
        %v520 = vpop.f32.mrb[0].mxu0
        %v521 = vadd.f32 %v240, %v520
        %v522 = vpop.f32.mrb[0].mxu0
        %523 = vmatprep.mubr.f32.mxu0 0.0
        %524 = vmatmul.mubr.f32.gmra.mrb[0].mxu0 %v316
        %v525 = vpop.f32.mrb[0].mxu0
        %v526 = vadd.f32 %v240, %v525
        %v527 = vpop.f32.mrb[0].mxu0
        %528 = vmatprep.mubr.f32.mxu0 0.0
        %529 = vmatmul.mubr.f32.gmra.mrb[0].mxu0 %v319
        %v530 = vpop.f32.mrb[0].mxu0
        %v531 = vadd.f32 %v240, %v530
        %v532 = vpop.f32.mrb[0].mxu0
        %533 = vmatprep.mubr.f32.mxu0 0.0
        %534 = vmatmul.mubr.f32.gmra.mrb[0].mxu0 %v322
        %v535 = vpop.f32.mrb[0].mxu0
        %v536 = vadd.f32 %v240, %v535
        %v537 = vpop.f32.mrb[0].mxu0
        %538 = vmatprep.mubr.f32.mxu0 0.0
        %539 = vmatmul.mubr.f32.gmra.mrb[0].mxu0 %v325
        %v540 = vpop.f32.mrb[0].mxu0
        %v541 = vadd.f32 %v240, %v540
        %v542 = vpop.f32.mrb[0].mxu0
        %543 = vmatprep.mubr.f32.mxu0 0.0
        %544 = vmatmul.mubr.f32.gmra.mrb[0].mxu0 %v328
        %v545 = vpop.f32.mrb[0].mxu0
        %v546 = vadd.f32 %v240, %v545
        %v547 = vpop.f32.mrb[0].mxu0
        %548 = vmatprep.mubr.f32.mxu0 0.0
        %549 = vmatmul.mubr.f32.gmra.mrb[0].mxu0 %v331
        %v550 = vpop.f32.mrb[0].mxu0
        %v551 = vadd.f32 %v240, %v550
        %v552 = vpop.f32.mrb[0].mxu0
        %553 = vmatprep.mubr.f32.mxu0 0.0
        %554 = vmatmul.mubr.f32.gmra.mrb[0].mxu0 %v334
        %v555 = vpop.f32.mrb[0].mxu0
        %v556 = vadd.f32 %v240, %v555
        %v557 = vpop.f32.mrb[0].mxu0
        %558 = vmatprep.mubr.f32.mxu0 0.0
        %559 = vmatmul.mubr.f32.gmra.mrb[0].mxu0 %v337
        %v560 = vpop.f32.mrb[0].mxu0
        %v561 = vadd.f32 %v240, %v560
        %v562 = vpop.f32.mrb[0].mxu0
        %563 = vdwg.mxu0
        %564 = vxpose.xlu0.b32.start [1/16] %v406, 128
        %565 = vxpose.xlu0.b32.cont [2/16] %v411, 128
        %566 = vxpose.xlu0.b32.cont [3/16] %v416, 128
        %567 = vxpose.xlu0.b32.cont [4/16] %v421, 128
        %568 = vxpose.xlu0.b32.cont [5/16] %v426, 128
        %569 = vxpose.xlu0.b32.cont [6/16] %v431, 128
        %570 = vxpose.xlu0.b32.cont [7/16] %v436, 128
        %571 = vxpose.xlu0.b32.cont [8/16] %v441, 128
        %572 = vxpose.xlu0.b32.cont [9/16] %v446, 128
        %573 = vxpose.xlu0.b32.cont [10/16] %v451, 128
        %574 = vxpose.xlu0.b32.cont [11/16] %v456, 128
        %575 = vxpose.xlu0.b32.cont [12/16] %v461, 128
        %576 = vxpose.xlu0.b32.cont [13/16] %v466, 128
        %577 = vxpose.xlu0.b32.cont [14/16] %v471, 128
        %578 = vxpose.xlu0.b32.cont [15/16] %v476, 128
        %579 = vxpose.xlu0.b32.end [16/16] %v481, 128
        %v580 = vpop.trf.xlu0
        %v581 = vpop.trf.xlu0
        %v582 = vpop.trf.xlu0
        %v583 = vpop.trf.xlu0
        %v584 = vpop.trf.xlu0
        %v585 = vpop.trf.xlu0
        %v586 = vpop.trf.xlu0
        %v587 = vpop.trf.xlu0
        %v588 = vpop.trf.xlu0
        %v589 = vpop.trf.xlu0
        %v590 = vpop.trf.xlu0
        %v591 = vpop.trf.xlu0
        %v592 = vpop.trf.xlu0
        %v593 = vpop.trf.xlu0
        %v594 = vpop.trf.xlu0
        %v595 = vpop.trf.xlu0
        %596 = vxpose.xlu0.b32.start [1/16] %v486, 128
        %597 = vxpose.xlu0.b32.cont [2/16] %v491, 128
        %598 = vxpose.xlu0.b32.cont [3/16] %v496, 128
        %599 = vxpose.xlu0.b32.cont [4/16] %v501, 128
        %600 = vxpose.xlu0.b32.cont [5/16] %v506, 128
        %601 = vxpose.xlu0.b32.cont [6/16] %v511, 128
        %602 = vxpose.xlu0.b32.cont [7/16] %v516, 128
        %603 = vxpose.xlu0.b32.cont [8/16] %v521, 128
        %604 = vxpose.xlu0.b32.cont [9/16] %v526, 128
        %605 = vxpose.xlu0.b32.cont [10/16] %v531, 128
        %606 = vxpose.xlu0.b32.cont [11/16] %v536, 128
        %607 = vxpose.xlu0.b32.cont [12/16] %v541, 128
        %608 = vxpose.xlu0.b32.cont [13/16] %v546, 128
        %609 = vxpose.xlu0.b32.cont [14/16] %v551, 128
        %610 = vxpose.xlu0.b32.cont [15/16] %v556, 128
        %611 = vxpose.xlu0.b32.end [16/16] %v561, 128
        %v612 = vpop.trf.xlu0
        %v613 = vpop.trf.xlu0
        %v614 = vpop.trf.xlu0
        %v615 = vpop.trf.xlu0
        %v616 = vpop.trf.xlu0
        %v617 = vpop.trf.xlu0
        %v618 = vpop.trf.xlu0
        %v619 = vpop.trf.xlu0
        %v620 = vpop.trf.xlu0
        %v621 = vpop.trf.xlu0
        %v622 = vpop.trf.xlu0
        %v623 = vpop.trf.xlu0
        %v624 = vpop.trf.xlu0
        %v625 = vpop.trf.xlu0
        %v626 = vpop.trf.xlu0
        %v627 = vpop.trf.xlu0
        %v628 = vld [vmem:[%s3] sm:$0x77]
        %v631 = vrot.slane %v580, 4
        %v632 = vrot.slane %v612, 4
        %635 = vrot.lane.b32.xlu0 %v631, 127
        %v636 = vpop.permute.xlu0 %635
        %637 = vrot.lane.b32.xlu0 %v632, 127
        %v638 = vpop.permute.xlu0 %637
        %v639 = vlaneseq
        %v640 = vand.u32 %v639, 127
        %vm641 = vcmp.lt.s32.totalorder %v640, 127
        %v642 = vsel %vm641, %v636, %v638
        %v643 = vsel %vm641, %v638, %v636
        %v645 = vlaneseq
        %v646 = vshrl.u32 %v645, 7
        %v647 = vsub.s32 0, %v646
        %v648 = vrot.slane %v628, %v647
        %v649 = vlaneseq
        %v650 = vshrl.u32 %v649, 7
        %v651 = vsub.s32 4, %v650
        %v652 = vrot.slane %v628, %v651
        %v655 = vlaneseq
        %v656 = vshrl.u32 %v655, 7
        %v657 = vsub.s32 0, %v656
        %v658 = vrot.slane %v648, %v657
        %v659 = vlaneseq
        %v660 = vshrl.u32 %v659, 7
        %v661 = vsub.s32 0, %v660
        %v662 = vrot.slane %v652, %v661
        %v663 = vmul.f32 %v642, %v658
        %v664 = vmul.f32 %v643, %v662
        %665 = vrot.lane.b32.xlu0 %v581, 112
        %v666 = vpop.permute.xlu0 %665
        %667 = vrot.lane.b32.xlu0 %v613, 112
        %v668 = vpop.permute.xlu0 %667
        %vm669 = vcmp.lt.s32.totalorder %v640, 112
        %v670 = vsel %vm669, %v666, %v668
        %v671 = vsel %vm669, %v668, %v666
        %v672 = vlaneseq
        %v673 = vshrl.u32 %v672, 7
        %v674 = vsub.s32 1, %v673
        %v675 = vrot.slane %v628, %v674
        %v676 = vlaneseq
        %v677 = vshrl.u32 %v676, 7
        %v678 = vsub.s32 5, %v677
        %v679 = vrot.slane %v628, %v678
        %v682 = vlaneseq
        %v683 = vshrl.u32 %v682, 7
        %v684 = vsub.s32 1, %v683
        %v685 = vrot.slane %v675, %v684
        %v686 = vlaneseq
        %v687 = vshrl.u32 %v686, 7
        %v688 = vsub.s32 1, %v687
        %v689 = vrot.slane %v679, %v688
        %v690 = vmul.f32 %v670, %v685
        %v691 = vmul.f32 %v671, %v689
        %v694 = vrot.slane %v581, 4
        %v695 = vrot.slane %v613, 4
        %698 = vrot.lane.b32.xlu0 %v694, 111
        %v699 = vpop.permute.xlu0 %698
        %700 = vrot.lane.b32.xlu0 %v695, 111
        %v701 = vpop.permute.xlu0 %700
        %vm702 = vcmp.lt.s32.totalorder %v640, 111
        %v703 = vsel %vm702, %v699, %v701
        %v704 = vsel %vm702, %v701, %v699
        %v705 = vlaneseq
        %v706 = vshrl.u32 %v705, 7
        %v707 = vsub.s32 2, %v706
        %v708 = vrot.slane %v628, %v707
        %v709 = vlaneseq
        %v710 = vshrl.u32 %v709, 7
        %v711 = vsub.s32 6, %v710
        %v712 = vrot.slane %v628, %v711
        %v715 = vlaneseq
        %v716 = vshrl.u32 %v715, 7
        %v717 = vsub.s32 2, %v716
        %v718 = vrot.slane %v708, %v717
        %v719 = vlaneseq
        %v720 = vshrl.u32 %v719, 7
        %v721 = vsub.s32 2, %v720
        %v722 = vrot.slane %v712, %v721
        %v723 = vmul.f32 %v703, %v718
        %v724 = vmul.f32 %v704, %v722
        %v725 = vadd.f32 %v580, %v663
        %v726 = vadd.f32 %v612, %v664
        %v727 = vadd.f32 %v725, %v690
        %v728 = vadd.f32 %v726, %v691
        %v729 = vadd.f32 %v727, %v723
        %v730 = vadd.f32 %v728, %v724
        %v733 = vcombine.low %v729, %v730
        %735 = vst [vmem:[%s191] sm:$0xff] %v733
        %s736 = sand.u32 %s115, 1
        %s737 = scalar_lea.sflag [#allocation3], %s736
        %s738 = sand.u32 %s115, 1
        %s739 = smul.addr %s738, 8
        %s740 = scalar_lea.vmem [#allocation2], %s739
        // Predicated region
        $region37: #{tpu_custom_call.1} parent=35 // pred_check
          %p741 = pneg %p125
        $region38: #{tpu_custom_call.1} parent=35 // pred_check_branch
          %743 = sbr.rel (%p741) target = $region40
        $region39: #{tpu_custom_call.1} parent=35 // pred_region
          %s744 = smul.u32 2, %s18
          %s746 = ssub.s32 128, 128
          %747 = vsyncadd %s737, %s746
          %s748 = smul.addr %s744, 64
          %s749 = scalar_lea.hbm %s4, %s748
          %s751 = sshll.u32 %s740, 4
          %s752 = int_to_ptr.vmem [resolvable:$true] %s751
          %754 = dma.vmem_to_hbm [thread:$0]  %s752, 128, %s749, %s737
        $region40: #{tpu_custom_call.1} parent=35 // pred_fallthru
          _
      $region36: #{tpu_custom_call.1} parent=5 // pred_fallthru
        _
      %p755 = scmp.le.s32.totalorder 2, %s13
      // Predicated region
      $region41: #{tpu_custom_call.1} parent=5 // pred_check
        %p756 = pneg %p755
      $region42: #{tpu_custom_call.1} parent=5 // pred_check_branch
        %758 = sbr.rel (%p756) target = $region44
      $region43: #{tpu_custom_call.1} parent=5 // pred_region
        %s759 = ssub.s32 %s13, 2
        // Predicated region
        $region45: #{tpu_custom_call.1} parent=43 // pred_check
          %p760 = pneg %p131
        $region46: #{tpu_custom_call.1} parent=43 // pred_check_branch
          %762 = sbr.rel (%p760) target = $region48
        $region47: #{tpu_custom_call.1} parent=43 // pred_region
          %s763 = sand.u32 %s116, 1
          %s764 = scalar_lea.sflag [#allocation3], %s763
          %s765 = sand.u32 %s116, 1
          %s766 = smul.addr %s765, 8
          %s767 = scalar_lea.vmem [#allocation2], %s766
          %768 = dma.done %s764, 128
        $region48: #{tpu_custom_call.1} parent=43 // pred_fallthru
          _
      $region44: #{tpu_custom_call.1} parent=5 // pred_fallthru
        _
    $region6: #{tpu_custom_call.1} parent=1 // loop_footer
      %s17 = sadd.s32 1, %s13
    $region7: #{tpu_custom_call.1} parent=1 // loop_footer_branch
      %12 = sbr.rel target = $region3
    $region8: #{tpu_custom_call.1} parent=1 // loop_exit
      _
    %769 = vsyncpa [#allocation3], 1
    %s770 = scalar_lea.sflag [#allocation3], 1
    %771 = vsyncpa %s770, 1

</llo_original>
